<compile_context>
chip_gen: v7x
topology: tpu7x:2x2x1
jax: 0.10.0
libtpu: 0.0.40
codegen_flags: <defaults>
</compile_context>

<pallas_src>
import functools

import jax
import jax.numpy as jnp
from jax import lax
from jax.experimental import pallas as pl
from jax.experimental.pallas import tpu as pltpu

_EXP_CH = 52       # 3DMM channels [0,52) = expression (weight 1), [52,C) = pose (weight 10)
_ROW_ALIGN = 16    # sublane multiple satisfying both f32 (8) and bf16 (16) tiling
_LANES = 128


def _round_up(x, m):
    return ((x + m - 1) // m) * m


def _physical_vmem_bytes():
    try:
        return int(pltpu.get_tpu_info().vmem_capacity_bytes)
    except Exception:
        return 64 << 20   # conservative fallback (v7x per-core VMEM)


def _tile_rows(nrows, max_rows):
    """Row-tile height: full extent if it fits, else an aligned max_rows chunk."""
    if nrows <= max_rows:
        return nrows              # single full-dim block (always a legal block shape)
    return max_rows               # multiple of _ROW_ALIGN; ragged tail masked in-kernel


# ---------------------------------------------------------------------------
# Fused kernel: emotion SSD + 3DMM SSD + KL sum in a single pass.
# ---------------------------------------------------------------------------
def _vae_partials_kernel(pe_ref, ge_ref, p3_ref, g3_ref, mu_ref, sg_ref,
                         oe_ref, o3_ref, ok_ref,
                         *, inner_tiles, tr_big, tr_kl, rows_big, rows_kl):
    i = pl.program_id(1)
    g = pl.program_id(0) * inner_tiles + i      # global row-tile index

    # Per-core partial-sum outputs stay resident across the inner ("arbitrary") axis.
    @pl.when(i == 0)
    def _init():
        oe_ref[...] = jnp.zeros_like(oe_ref)
        o3_ref[...] = jnp.zeros_like(o3_ref)
        ok_ref[...] = jnp.zeros_like(ok_ref)

    big_start = g * tr_big

    @pl.when(big_start < rows_big)              # skip tiles past the emotion/3DMM extent
    def _ssd():
        def accum(p_ref, g_ref, o_ref):
            d = p_ref[...].astype(jnp.float32) - g_ref[...].astype(jnp.float32)
            rid = lax.broadcasted_iota(jnp.int32, d.shape, 0) + big_start
            sq = jnp.where(rid < rows_big, d * d, 0.0)   # mask ragged-tail rows
            o_ref[...] += jnp.sum(sq, axis=0, keepdims=True)
        accum(pe_ref, ge_ref, oe_ref)
        accum(p3_ref, g3_ref, o3_ref)

    kl_start = g * tr_kl

    @pl.when(kl_start < rows_kl)                # KL stream is usually one tiny tile
    def _kl():
        mu = mu_ref[...].astype(jnp.float32)
        sg = sg_ref[...].astype(jnp.float32)
        kl = 0.5 * (sg * sg + mu * mu - 1.0) - jnp.log(sg)   # log -> EUP (idle slot)
        rid = lax.broadcasted_iota(jnp.int32, kl.shape, 0) + kl_start
        kl = jnp.where(rid < rows_kl, kl, 0.0)
        ok_ref[...] += jnp.sum(kl, axis=0, keepdims=True)


# ---------------------------------------------------------------------------
# Wrapper: copy-free reshapes, VMEM-budgeted tiling, final weighting in JAX.
# ---------------------------------------------------------------------------
def vae_loss(gt_emotion, gt_3dmm, pred_emotion, pred_3dmm, distribution,
             kl_p=0.0002, max_tile_rows=None):
    """JAX/Pallas equivalent of VAELoss.forward.

    distribution: tuple (mu, sigma), each of shape [T, B, D] -- the T Normal
    distributions of the PyTorch list stacked along the leading axis.
    Returns (loss, rec_loss, kld_loss).
    """
    # TODO(synk): torch passes a list of torch.distributions.Normal; represented here
    # as stacked (mu, sigma) arrays since distribution objects have no Pallas analogue.
    mu, sigma = distribution
    B, S, c3 = gt_3dmm.shape
    emo = gt_emotion.shape[-1]
    d_lat = mu.shape[-1]
    assert c3 > _EXP_CH, "3DMM channel dim must be > 52 (52 exp + pose channels)"

    # Copy-free flattening of leading dims (row-major merge); NO padding copies.
    pe2 = pred_emotion.reshape(-1, emo)
    ge2 = gt_emotion.reshape(-1, emo)
    p32 = pred_3dmm.reshape(-1, c3)
    g32 = gt_3dmm.reshape(-1, c3)
    mu2 = mu.reshape(-1, d_lat)
    sg2 = sigma.reshape(-1, d_lat)

    rows_big = pe2.shape[0]      # B * S
    rows_kl = mu2.shape[0]       # T * B

    # --- tile sizing from the device's VMEM (double-buffered inputs, lane-padded) ----
    phys = _physical_vmem_bytes()
    budget = min((phys * 3) // 8, 32 << 20)
    per_row = 2 * 2 * 4 * (_round_up(emo, _LANES) + _round_up(c3, _LANES)
                           + _round_up(d_lat, _LANES))
    auto_rows = (budget // per_row) // _ROW_ALIGN * _ROW_ALIGN
    max_rows = auto_rows if max_tile_rows is None else max_tile_rows
    max_rows = max(_ROW_ALIGN, min(8192, (max_rows // _ROW_ALIGN) * _ROW_ALIGN))

    tr_big = _tile_rows(rows_big, max_rows)
    tr_kl = _tile_rows(rows_kl, max_rows)
    tiles_big = pl.cdiv(rows_big, tr_big)
    tiles_kl = pl.cdiv(rows_kl, tr_kl)
    total_tiles = max(tiles_big, tiles_kl)

    num_cores = 2 if total_tiles >= 2 else 1    # split rows across v7x's 2 TCs
    inner_tiles = pl.cdiv(total_tiles, num_cores)

    def big_map(c, i):
        return (jnp.minimum(c * inner_tiles + i, tiles_big - 1), 0)

    def kl_map(c, i):
        return (jnp.minimum(c * inner_tiles + i, tiles_kl - 1), 0)

    def out_map(c, i):
        return (c, 0, 0)

    kernel = functools.partial(
        _vae_partials_kernel,
        inner_tiles=inner_tiles, tr_big=tr_big, tr_kl=tr_kl,
        rows_big=rows_big, rows_kl=rows_kl)

    n_emo = rows_big * emo
    n_3d = rows_big * c3
    n_kl = rows_kl * d_lat
    cost = pl.CostEstimate(
        flops=3 * (n_emo + n_3d) + 8 * n_kl,
        transcendentals=n_kl,
        bytes_accessed=8 * (n_emo + n_3d + n_kl),
    )

    out_e, out_3, out_k = pl.pallas_call(
        kernel,
        out_shape=(
            jax.ShapeDtypeStruct((num_cores, 1, emo), jnp.float32),
            jax.ShapeDtypeStruct((num_cores, 1, c3), jnp.float32),
            jax.ShapeDtypeStruct((num_cores, 1, d_lat), jnp.float32),
        ),
        grid=(num_cores, inner_tiles),
        in_specs=[
            pl.BlockSpec((tr_big, emo), big_map),
            pl.BlockSpec((tr_big, emo), big_map),
            pl.BlockSpec((tr_big, c3), big_map),
            pl.BlockSpec((tr_big, c3), big_map),
            pl.BlockSpec((tr_kl, d_lat), kl_map),
            pl.BlockSpec((tr_kl, d_lat), kl_map),
        ],
        out_specs=(
            pl.BlockSpec((None, 1, emo), out_map),
            pl.BlockSpec((None, 1, c3), out_map),
            pl.BlockSpec((None, 1, d_lat), out_map),
        ),
        compiler_params=pltpu.CompilerParams(
            dimension_semantics=("parallel", "arbitrary"),
            vmem_limit_bytes=int(min((phys * 3) // 4, 64 << 20)),
        ),
        cost_estimate=cost,
    )(pe2, ge2, p32, g32, mu2, sg2)

    # Tiny per-core partials -> final scalars (plain JAX; negligible work).
    ssd_emo = jnp.sum(out_e)
    ssd_exp = jnp.sum(out_3[..., :_EXP_CH])
    ssd_pose = jnp.sum(out_3[..., _EXP_CH:])
    kl_sum = jnp.sum(out_k)

    n_exp = rows_big * _EXP_CH
    n_pose = rows_big * (c3 - _EXP_CH)
    rec_loss = ssd_emo / n_emo + ssd_exp / n_exp + 10.0 * (ssd_pose / n_pose)
    kld_loss = kl_sum / n_kl
    loss = rec_loss + kl_p * kld_loss
    return loss, rec_loss, kld_loss


# ---------------------------------------------------------------------------
# Pure-JAX reference (sanity check)
# ---------------------------------------------------------------------------
def _vae_loss_ref(gt_emotion, gt_3dmm, pred_emotion, pred_3dmm, distribution, kl_p=0.0002):
    mu, sigma = distribution
    mse = lambda a, b: jnp.mean((a - b) ** 2)
    rec = (mse(pred_emotion, gt_emotion)
           + mse(pred_3dmm[:, :, :_EXP_CH], gt_3dmm[:, :, :_EXP_CH])
           + 10.0 * mse(pred_3dmm[:, :, _EXP_CH:], gt_3dmm[:, :, _EXP_CH:]))
    kl = 0.5 * (sigma ** 2 + mu ** 2 - 1.0) - jnp.log(sigma)
    kld = jnp.mean(kl)
    return rec + kl_p * kld, rec, kld


# ---------------------------------------------------------------------------
if __name__ == "__main__":
    def run_case(key, B, S, EMO, C3D, T, D, rtol, atol, max_tile_rows=None):
        ks = jax.random.split(key, 6)
        gt_emotion = jax.random.normal(ks[0], (B, S, EMO), jnp.float32)
        pred_emotion = jax.random.normal(ks[1], (B, S, EMO), jnp.float32)
        gt_3dmm = jax.random.normal(ks[2], (B, S, C3D), jnp.float32)
        pred_3dmm = jax.random.normal(ks[3], (B, S, C3D), jnp.float32)
        mu = jax.random.normal(ks[4], (T, B, D), jnp.float32)
        sigma = jax.nn.softplus(jax.random.normal(ks[5], (T, B, D), jnp.float32)) + 1e-3

        fn = jax.jit(functools.partial(vae_loss, max_tile_rows=max_tile_rows))
        out = fn(gt_emotion, gt_3dmm, pred_emotion, pred_3dmm, (mu, sigma))
        out = jax.block_until_ready(out)
        ref = _vae_loss_ref(gt_emotion, gt_3dmm, pred_emotion, pred_3dmm, (mu, sigma))
        for got, want in zip(out, ref):
            assert jnp.allclose(got, want, rtol=rtol, atol=atol), (got, want)

    key = jax.random.PRNGKey(0)
    k1, k2 = jax.random.split(key)

    # Small shapes matching the module: batch=2, seq=8, 25-d emotion,
    # 58-d 3DMM (52 exp + 6 pose), 2 latent Normals of dim 32.
    run_case(k1, B=2, S=8, EMO=25, C3D=58, T=2, D=32, rtol=1e-5, atol=1e-5)

    # Multi-tile / ragged-tail / two-core-split path (tile override keeps it cheap).
    run_case(k2, B=2, S=2100, EMO=25, C3D=58, T=3, D=32, rtol=5e-4, atol=1e-4,
             max_tile_rows=512)

    print("KERNEL_OK")
</pallas_src>

<mosaic_0001>
module attributes {stable_mosaic.version = 11 : i64} {
  func.func @_vae_partials_kernel(%arg0: i32, %arg1: i32, %arg2: memref<16x25xf32, #tpu.memory_space<vmem>>, %arg3: memref<16x25xf32, #tpu.memory_space<vmem>>, %arg4: memref<16x58xf32, #tpu.memory_space<vmem>>, %arg5: memref<16x58xf32, #tpu.memory_space<vmem>>, %arg6: memref<4x32xf32, #tpu.memory_space<vmem>>, %arg7: memref<4x32xf32, #tpu.memory_space<vmem>>, %arg8: memref<1x1x25xf32, #tpu.memory_space<vmem>>, %arg9: memref<1x1x58xf32, #tpu.memory_space<vmem>>, %arg10: memref<1x1x32xf32, #tpu.memory_space<vmem>>) attributes {dimension_semantics = [#tpu.dimension_semantics<parallel>, #tpu.dimension_semantics<arbitrary>], iteration_bounds = array<i64: 1, 1>, scalar_prefetch = 0 : i64, scratch_operands = 0 : i64, tpu.core_type = #tpu.core_type<tc>, window_params = [{transform_indices = @transform_0, window_bounds = array<i64: 16, 25>}, {transform_indices = @transform_1, window_bounds = array<i64: 16, 25>}, {transform_indices = @transform_2, window_bounds = array<i64: 16, 58>}, {transform_indices = @transform_3, window_bounds = array<i64: 16, 58>}, {transform_indices = @transform_4, window_bounds = array<i64: 4, 32>}, {transform_indices = @transform_5, window_bounds = array<i64: 4, 32>}, {transform_indices = @transform_6, window_bounds = array<i64: 1, 1, 25>}, {transform_indices = @transform_7, window_bounds = array<i64: 1, 1, 58>}, {transform_indices = @transform_8, window_bounds = array<i64: 1, 1, 32>}]} {
    %c1_i32 = arith.constant 1 : i32
    %0 = arith.muli %arg0, %c1_i32 : i32
    %1 = arith.addi %0, %arg1 : i32
    %c0_i32 = arith.constant 0 : i32
    %2 = arith.cmpi eq, %arg1, %c0_i32 : i32
    %3 = arith.extui %2 : i1 to i32
    %c0_i32_0 = arith.constant 0 : i32
    %4 = arith.cmpi ne, %3, %c0_i32_0 : i32
    scf.if %4 {
      %cst = arith.constant 0.000000e+00 : f32
      %13 = vector.broadcast %cst : f32 to vector<1x25xf32>
      %c0 = arith.constant 0 : index
      %c0_5 = arith.constant 0 : index
      %c0_6 = arith.constant 0 : index
      %14 = vector.load %arg8[%c0, %c0_5, %c0_6] : memref<1x1x25xf32, #tpu.memory_space<vmem>>, vector<1x1x25xf32>
      %15 = vector.shape_cast %14 : vector<1x1x25xf32> to vector<1x25xf32>
      %16 = vector.shape_cast %13 : vector<1x25xf32> to vector<1x1x25xf32>
      tpu.vector_store %arg8[%c0, %c0_5, %c0_6], %16 {strides = array<i32>} : memref<1x1x25xf32, #tpu.memory_space<vmem>>, vector<1x1x25xf32>,
      %cst_7 = arith.constant 0.000000e+00 : f32
      %17 = vector.broadcast %cst_7 : f32 to vector<1x58xf32>
      %c0_8 = arith.constant 0 : index
      %c0_9 = arith.constant 0 : index
      %c0_10 = arith.constant 0 : index
      %18 = vector.load %arg9[%c0_8, %c0_9, %c0_10] : memref<1x1x58xf32, #tpu.memory_space<vmem>>, vector<1x1x58xf32>
      %19 = vector.shape_cast %18 : vector<1x1x58xf32> to vector<1x58xf32>
      %20 = vector.shape_cast %17 : vector<1x58xf32> to vector<1x1x58xf32>
      tpu.vector_store %arg9[%c0_8, %c0_9, %c0_10], %20 {strides = array<i32>} : memref<1x1x58xf32, #tpu.memory_space<vmem>>, vector<1x1x58xf32>,
      %cst_11 = arith.constant 0.000000e+00 : f32
      %21 = vector.broadcast %cst_11 : f32 to vector<1x32xf32>
      %c0_12 = arith.constant 0 : index
      %c0_13 = arith.constant 0 : index
      %c0_14 = arith.constant 0 : index
      %22 = vector.load %arg10[%c0_12, %c0_13, %c0_14] : memref<1x1x32xf32, #tpu.memory_space<vmem>>, vector<1x1x32xf32>
      %23 = vector.shape_cast %22 : vector<1x1x32xf32> to vector<1x32xf32>
      %24 = vector.shape_cast %21 : vector<1x32xf32> to vector<1x1x32xf32>
      tpu.vector_store %arg10[%c0_12, %c0_13, %c0_14], %24 {strides = array<i32>} : memref<1x1x32xf32, #tpu.memory_space<vmem>>, vector<1x1x32xf32>,
    } else {
    }
    %c16_i32 = arith.constant 16 : i32
    %5 = arith.muli %1, %c16_i32 : i32
    %c16_i32_1 = arith.constant 16 : i32
    %6 = arith.cmpi slt, %5, %c16_i32_1 : i32
    %7 = arith.extui %6 : i1 to i32
    %c0_i32_2 = arith.constant 0 : i32
    %8 = arith.cmpi ne, %7, %c0_i32_2 : i32
    scf.if %8 {
      %c0 = arith.constant 0 : index
      %c0_5 = arith.constant 0 : index
      %13 = vector.load %arg2[%c0, %c0_5] : memref<16x25xf32, #tpu.memory_space<vmem>>, vector<16x25xf32>
      %c0_6 = arith.constant 0 : index
      %c0_7 = arith.constant 0 : index
      %14 = vector.load %arg3[%c0_6, %c0_7] : memref<16x25xf32, #tpu.memory_space<vmem>>, vector<16x25xf32>
      %15 = arith.subf %13, %14 : vector<16x25xf32>
      %16 = tpu.iota {dimensions = array<i32: 0>} : vector<16x25xi32>
      %17 = vector.broadcast %5 : i32 to vector<16x25xi32>
      %18 = arith.addi %16, %17 : vector<16x25xi32>
      %c16_i32_8 = arith.constant 16 : i32
      %19 = vector.broadcast %c16_i32_8 : i32 to vector<16x25xi32>
      %20 = arith.cmpi slt, %18, %19 : vector<16x25xi32>
      %21 = arith.mulf %15, %15 : vector<16x25xf32>
      %cst = arith.constant 0.000000e+00 : f32
      %22 = vector.broadcast %cst : f32 to vector<16x25xf32>
      %23 = arith.select %20, %21, %22 : vector<16x25xi1>, vector<16x25xf32>
      %c0_9 = arith.constant 0 : index
      %c0_10 = arith.constant 0 : index
      %c0_11 = arith.constant 0 : index
      %24 = vector.load %arg8[%c0_9, %c0_10, %c0_11] : memref<1x1x25xf32, #tpu.memory_space<vmem>>, vector<1x1x25xf32>
      %25 = vector.shape_cast %24 : vector<1x1x25xf32> to vector<1x25xf32>
      %cst_12 = arith.constant dense<0.000000e+00> : vector<25xf32>
      %26 = vector.multi_reduction <add>, %23, %cst_12 [0] : vector<16x25xf32> to vector<25xf32>
      %27 = vector.shape_cast %26 : vector<25xf32> to vector<1x25xf32>
      %28 = arith.addf %25, %27 : vector<1x25xf32>
      %c0_13 = arith.constant 0 : index
      %c0_14 = arith.constant 0 : index
      %c0_15 = arith.constant 0 : index
      %29 = vector.load %arg8[%c0_13, %c0_14, %c0_15] : memref<1x1x25xf32, #tpu.memory_space<vmem>>, vector<1x1x25xf32>
      %30 = vector.shape_cast %29 : vector<1x1x25xf32> to vector<1x25xf32>
      %31 = vector.shape_cast %28 : vector<1x25xf32> to vector<1x1x25xf32>
      tpu.vector_store %arg8[%c0_13, %c0_14, %c0_15], %31 {strides = array<i32>} : memref<1x1x25xf32, #tpu.memory_space<vmem>>, vector<1x1x25xf32>,
      %c0_16 = arith.constant 0 : index
      %c0_17 = arith.constant 0 : index
      %32 = vector.load %arg4[%c0_16, %c0_17] : memref<16x58xf32, #tpu.memory_space<vmem>>, vector<16x58xf32>
      %c0_18 = arith.constant 0 : index
      %c0_19 = arith.constant 0 : index
      %33 = vector.load %arg5[%c0_18, %c0_19] : memref<16x58xf32, #tpu.memory_space<vmem>>, vector<16x58xf32>
      %34 = arith.subf %32, %33 : vector<16x58xf32>
      %35 = tpu.iota {dimensions = array<i32: 0>} : vector<16x58xi32>
      %36 = vector.broadcast %5 : i32 to vector<16x58xi32>
      %37 = arith.addi %35, %36 : vector<16x58xi32>
      %c16_i32_20 = arith.constant 16 : i32
      %38 = vector.broadcast %c16_i32_20 : i32 to vector<16x58xi32>
      %39 = arith.cmpi slt, %37, %38 : vector<16x58xi32>
      %40 = arith.mulf %34, %34 : vector<16x58xf32>
      %cst_21 = arith.constant 0.000000e+00 : f32
      %41 = vector.broadcast %cst_21 : f32 to vector<16x58xf32>
      %42 = arith.select %39, %40, %41 : vector<16x58xi1>, vector<16x58xf32>
      %c0_22 = arith.constant 0 : index
      %c0_23 = arith.constant 0 : index
      %c0_24 = arith.constant 0 : index
      %43 = vector.load %arg9[%c0_22, %c0_23, %c0_24] : memref<1x1x58xf32, #tpu.memory_space<vmem>>, vector<1x1x58xf32>
      %44 = vector.shape_cast %43 : vector<1x1x58xf32> to vector<1x58xf32>
      %cst_25 = arith.constant dense<0.000000e+00> : vector<58xf32>
      %45 = vector.multi_reduction <add>, %42, %cst_25 [0] : vector<16x58xf32> to vector<58xf32>
      %46 = vector.shape_cast %45 : vector<58xf32> to vector<1x58xf32>
      %47 = arith.addf %44, %46 : vector<1x58xf32>
      %c0_26 = arith.constant 0 : index
      %c0_27 = arith.constant 0 : index
      %c0_28 = arith.constant 0 : index
      %48 = vector.load %arg9[%c0_26, %c0_27, %c0_28] : memref<1x1x58xf32, #tpu.memory_space<vmem>>, vector<1x1x58xf32>
      %49 = vector.shape_cast %48 : vector<1x1x58xf32> to vector<1x58xf32>
      %50 = vector.shape_cast %47 : vector<1x58xf32> to vector<1x1x58xf32>
      tpu.vector_store %arg9[%c0_26, %c0_27, %c0_28], %50 {strides = array<i32>} : memref<1x1x58xf32, #tpu.memory_space<vmem>>, vector<1x1x58xf32>,
    } else {
    }
    %c4_i32 = arith.constant 4 : i32
    %9 = arith.muli %1, %c4_i32 : i32
    %c4_i32_3 = arith.constant 4 : i32
    %10 = arith.cmpi slt, %9, %c4_i32_3 : i32
    %11 = arith.extui %10 : i1 to i32
    %c0_i32_4 = arith.constant 0 : i32
    %12 = arith.cmpi ne, %11, %c0_i32_4 : i32
    scf.if %12 {
      %c0 = arith.constant 0 : index
      %c0_5 = arith.constant 0 : index
      %13 = vector.load %arg6[%c0, %c0_5] : memref<4x32xf32, #tpu.memory_space<vmem>>, vector<4x32xf32>
      %c0_6 = arith.constant 0 : index
      %c0_7 = arith.constant 0 : index
      %14 = vector.load %arg7[%c0_6, %c0_7] : memref<4x32xf32, #tpu.memory_space<vmem>>, vector<4x32xf32>
      %15 = arith.mulf %14, %14 : vector<4x32xf32>
      %16 = arith.mulf %13, %13 : vector<4x32xf32>
      %17 = arith.addf %15, %16 : vector<4x32xf32>
      %cst = arith.constant 1.000000e+00 : f32
      %18 = vector.broadcast %cst : f32 to vector<4x32xf32>
      %19 = arith.subf %17, %18 : vector<4x32xf32>
      %cst_8 = arith.constant 5.000000e-01 : f32
      %20 = vector.broadcast %cst_8 : f32 to vector<4x32xf32>
      %21 = arith.mulf %20, %19 : vector<4x32xf32>
      %22 = math.log %14 : vector<4x32xf32>
      %23 = arith.subf %21, %22 : vector<4x32xf32>
      %24 = tpu.iota {dimensions = array<i32: 0>} : vector<4x32xi32>
      %25 = vector.broadcast %9 : i32 to vector<4x32xi32>
      %26 = arith.addi %24, %25 : vector<4x32xi32>
      %c4_i32_9 = arith.constant 4 : i32
      %27 = vector.broadcast %c4_i32_9 : i32 to vector<4x32xi32>
      %28 = arith.cmpi slt, %26, %27 : vector<4x32xi32>
      %cst_10 = arith.constant 0.000000e+00 : f32
      %29 = vector.broadcast %cst_10 : f32 to vector<4x32xf32>
      %30 = arith.select %28, %23, %29 : vector<4x32xi1>, vector<4x32xf32>
      %c0_11 = arith.constant 0 : index
      %c0_12 = arith.constant 0 : index
      %c0_13 = arith.constant 0 : index
      %31 = vector.load %arg10[%c0_11, %c0_12, %c0_13] : memref<1x1x32xf32, #tpu.memory_space<vmem>>, vector<1x1x32xf32>
      %32 = vector.shape_cast %31 : vector<1x1x32xf32> to vector<1x32xf32>
      %cst_14 = arith.constant dense<0.000000e+00> : vector<32xf32>
      %33 = vector.multi_reduction <add>, %30, %cst_14 [0] : vector<4x32xf32> to vector<32xf32>
      %34 = vector.shape_cast %33 : vector<32xf32> to vector<1x32xf32>
      %35 = arith.addf %32, %34 : vector<1x32xf32>
      %c0_15 = arith.constant 0 : index
      %c0_16 = arith.constant 0 : index
      %c0_17 = arith.constant 0 : index
      %36 = vector.load %arg10[%c0_15, %c0_16, %c0_17] : memref<1x1x32xf32, #tpu.memory_space<vmem>>, vector<1x1x32xf32>
      %37 = vector.shape_cast %36 : vector<1x1x32xf32> to vector<1x32xf32>
      %38 = vector.shape_cast %35 : vector<1x32xf32> to vector<1x1x32xf32>
      tpu.vector_store %arg10[%c0_15, %c0_16, %c0_17], %38 {strides = array<i32>} : memref<1x1x32xf32, #tpu.memory_space<vmem>>, vector<1x1x32xf32>,
    } else {
    }
    return
  }
  func.func @transform_0(%arg0: i32, %arg1: i32) -> (i32, i32) {
    %c1_i32 = arith.constant 1 : i32
    %0 = arith.muli %arg0, %c1_i32 : i32
    %1 = arith.addi %0, %arg1 : i32
    %c0_i32 = arith.constant 0 : i32
    %2 = arith.minsi %1, %c0_i32 : i32
    %c0_i32_0 = arith.constant 0 : i32
    %c0_i32_1 = arith.constant 0 : i32
    return %2, %c0_i32_0 : i32, i32
  }
  func.func @transform_1(%arg0: i32, %arg1: i32) -> (i32, i32) {
    %c1_i32 = arith.constant 1 : i32
    %0 = arith.muli %arg0, %c1_i32 : i32
    %1 = arith.addi %0, %arg1 : i32
    %c0_i32 = arith.constant 0 : i32
    %2 = arith.minsi %1, %c0_i32 : i32
    %c0_i32_0 = arith.constant 0 : i32
    %c0_i32_1 = arith.constant 0 : i32
    return %2, %c0_i32_0 : i32, i32
  }
  func.func @transform_2(%arg0: i32, %arg1: i32) -> (i32, i32) {
    %c1_i32 = arith.constant 1 : i32
    %0 = arith.muli %arg0, %c1_i32 : i32
    %1 = arith.addi %0, %arg1 : i32
    %c0_i32 = arith.constant 0 : i32
    %2 = arith.minsi %1, %c0_i32 : i32
    %c0_i32_0 = arith.constant 0 : i32
    %c0_i32_1 = arith.constant 0 : i32
    return %2, %c0_i32_0 : i32, i32
  }
  func.func @transform_3(%arg0: i32, %arg1: i32) -> (i32, i32) {
    %c1_i32 = arith.constant 1 : i32
    %0 = arith.muli %arg0, %c1_i32 : i32
    %1 = arith.addi %0, %arg1 : i32
    %c0_i32 = arith.constant 0 : i32
    %2 = arith.minsi %1, %c0_i32 : i32
    %c0_i32_0 = arith.constant 0 : i32
    %c0_i32_1 = arith.constant 0 : i32
    return %2, %c0_i32_0 : i32, i32
  }
  func.func @transform_4(%arg0: i32, %arg1: i32) -> (i32, i32) {
    %c1_i32 = arith.constant 1 : i32
    %0 = arith.muli %arg0, %c1_i32 : i32
    %1 = arith.addi %0, %arg1 : i32
    %c0_i32 = arith.constant 0 : i32
    %2 = arith.minsi %1, %c0_i32 : i32
    %c0_i32_0 = arith.constant 0 : i32
    %c0_i32_1 = arith.constant 0 : i32
    return %2, %c0_i32_0 : i32, i32
  }
  func.func @transform_5(%arg0: i32, %arg1: i32) -> (i32, i32) {
    %c1_i32 = arith.constant 1 : i32
    %0 = arith.muli %arg0, %c1_i32 : i32
    %1 = arith.addi %0, %arg1 : i32
    %c0_i32 = arith.constant 0 : i32
    %2 = arith.minsi %1, %c0_i32 : i32
    %c0_i32_0 = arith.constant 0 : i32
    %c0_i32_1 = arith.constant 0 : i32
    return %2, %c0_i32_0 : i32, i32
  }
  func.func @transform_6(%arg0: i32, %arg1: i32) -> (i32, i32, i32) {
    %c0_i32 = arith.constant 0 : i32
    %c0_i32_0 = arith.constant 0 : i32
    %c0_i32_1 = arith.constant 0 : i32
    return %arg0, %c0_i32, %c0_i32_0 : i32, i32, i32
  }
  func.func @transform_7(%arg0: i32, %arg1: i32) -> (i32, i32, i32) {
    %c0_i32 = arith.constant 0 : i32
    %c0_i32_0 = arith.constant 0 : i32
    %c0_i32_1 = arith.constant 0 : i32
    return %arg0, %c0_i32, %c0_i32_0 : i32, i32, i32
  }
  func.func @transform_8(%arg0: i32, %arg1: i32) -> (i32, i32, i32) {
    %c0_i32 = arith.constant 0 : i32
    %c0_i32_0 = arith.constant 0 : i32
    %c0_i32_1 = arith.constant 0 : i32
    return %arg0, %c0_i32, %c0_i32_0 : i32, i32, i32
  }
}

</mosaic_0001>

<llo_original>
// kernel: vae_loss.1
$region0: #{vae_loss.1}
  #allocation0 [shape = 'u32[]', space=smem, size = 0x4, offset = 0x4, fixed_abs, tag = 'smem constant byte address 0x4 - core index']
  #allocation1 [shape = 'u32[144,128]{1,0:T(1,128)}', space=vmem, size = 0x12000, scoped, tag = 'internal scratch']
  %s0 = inlined_call_operand.vmem [shape: f32[16,25], index: 0, kind: input, shape index: {}]
  %s1 = inlined_call_operand.vmem [shape: f32[16,25], index: 1, kind: input, shape index: {}]
  %s2 = inlined_call_operand.hbm [shape: f32[16,58], index: 2, kind: input, shape index: {}]
  %s3 = inlined_call_operand.hbm [shape: f32[16,58], index: 3, kind: input, shape index: {}]
  %s4 = inlined_call_operand.hbm [shape: f32[4,32], index: 4, kind: input, shape index: {}]
  %s5 = inlined_call_operand.hbm [shape: f32[4,32], index: 5, kind: input, shape index: {}]
  %s6 = inlined_call_operand.vmem [shape: f32[1,1,25], index: 6, kind: output, shape index: {0}]
  %s7 = inlined_call_operand.vmem [shape: f32[1,1,58], index: 7, kind: output, shape index: {1}]
  %s8 = inlined_call_operand.vmem [shape: f32[1,1,32], index: 8, kind: output, shape index: {2}]
  %9 = xla_tuple %s6, %s7, %s8
  %s10 = sld [smem:[#allocation0]]
  $region78: #{vae_loss.1} parent=0
    _
  %s12 = ssub.s32 1, %s10
  %s13 = scalar_select 0, %s12, %s10
  $region1: #{vae_loss.1} parent=0
    #allocation2 [shape = 'u8[8192]{0}', space=vmem, size = 0x2000, scoped, tag = 'input window, operand 2, single buffered']
    #allocation3 [shape = 's32[1]{0}', space=sflag, size = 0x4, scoped, tag = 'scoped memory for vae_loss.1']
    #allocation4 [shape = 'u8[8192]{0}', space=vmem, size = 0x2000, scoped, tag = 'input window, operand 3, single buffered']
    #allocation5 [shape = 's32[1]{0}', space=sflag, size = 0x4, scoped, tag = 'scoped memory for vae_loss.1']
    #allocation6 [shape = 'u8[2048]{0}', space=vmem, size = 0x800, scoped, tag = 'input window, operand 4, single buffered']
    #allocation7 [shape = 'u8[2048]{0}', space=vmem, size = 0x800, scoped, tag = 'input window, operand 5, single buffered']
    #allocation8 [shape = 's32[1]{0}', space=sflag, size = 0x4, scoped, tag = 'scoped memory for vae_loss.1']
    %14 = vsyncpa [#allocation3], 0
    %15 = vsyncpa [#allocation5], 0
    %16 = vsyncpa [#allocation8], 0
    // Predicated region
    $region2: #{vae_loss.1} parent=1 // pred_check
      _
    $region3: #{vae_loss.1} parent=1 // pred_check_branch
      %18 = sbr.rel (0) target = $region5
    $region4: #{vae_loss.1} parent=1 // pred_region
      %s19 = sadd.s32 0, 0
      %p20 = scmp.lt.s32.totalorder %s19, 0
      %s21 = scalar_select %p20, %s19, 0
      %s22 = smul.u32 2, %s21
      %p23 = scmp.lt.s32.totalorder %s22, 1
      %s24 = scalar_select %p23, %s22, 1
      %s25 = smul.addr %s24, 8
      %s26 = scalar_lea.vmem %s0, %s25
      %s27 = sadd.s32 0, 0
      %p28 = scmp.lt.s32.totalorder %s27, 0
      %s29 = scalar_select %p28, %s27, 0
      %s30 = smul.u32 2, %s29
    $region5: #{vae_loss.1} parent=1 // pred_fallthru
      _
    // Predicated region
    $region6: #{vae_loss.1} parent=1 // pred_check
      _
    $region7: #{vae_loss.1} parent=1 // pred_check_branch
      %32 = sbr.rel (0) target = $region9
    $region8: #{vae_loss.1} parent=1 // pred_region
      %s33 = sadd.s32 0, 0
      %p34 = scmp.lt.s32.totalorder %s33, 0
      %s35 = scalar_select %p34, %s33, 0
      %s36 = smul.u32 2, %s35
      %p37 = scmp.lt.s32.totalorder %s36, 1
      %s38 = scalar_select %p37, %s36, 1
      %s39 = smul.addr %s38, 8
      %s40 = scalar_lea.vmem %s1, %s39
      %s41 = sadd.s32 0, 0
      %p42 = scmp.lt.s32.totalorder %s41, 0
      %s43 = scalar_select %p42, %s41, 0
      %s44 = smul.u32 2, %s43
    $region9: #{vae_loss.1} parent=1 // pred_fallthru
      _
    // Predicated region
    $region10: #{vae_loss.1} parent=1 // pred_check
      _
    $region11: #{vae_loss.1} parent=1 // pred_check_branch
      %46 = sbr.rel (0) target = $region13
    $region12: #{vae_loss.1} parent=1 // pred_region
      %s47 = sadd.s32 0, 0
      %p48 = scmp.lt.s32.totalorder %s47, 0
      %s49 = scalar_select %p48, %s47, 0
      %s50 = smul.u32 2, %s49
      %s52 = ssub.s32 256, 256
      %53 = vsyncadd [#allocation3], %s52
      %s54 = smul.addr %s50, 128
      %s55 = scalar_lea.hbm %s2, %s54
      %s56 = sshll.u32 [#allocation2], 4
      %s57 = int_to_ptr.vmem [resolvable:$true] %s56
      %62 = dma.hbm_to_vmem [thread:$0]  %s55, 256, %s57, [#allocation3], 128, 128, 8
    $region13: #{vae_loss.1} parent=1 // pred_fallthru
      _
    // Predicated region
    $region14: #{vae_loss.1} parent=1 // pred_check
      _
    $region15: #{vae_loss.1} parent=1 // pred_check_branch
      %64 = sbr.rel (0) target = $region17
    $region16: #{vae_loss.1} parent=1 // pred_region
      %s65 = sadd.s32 0, 0
      %p66 = scmp.lt.s32.totalorder %s65, 0
      %s67 = scalar_select %p66, %s65, 0
      %s68 = smul.u32 2, %s67
      %s70 = ssub.s32 256, 256
      %71 = vsyncadd [#allocation5], %s70
      %s72 = smul.addr %s68, 128
      %s73 = scalar_lea.hbm %s3, %s72
      %s74 = sshll.u32 [#allocation4], 4
      %s75 = int_to_ptr.vmem [resolvable:$true] %s74
      %80 = dma.hbm_to_vmem [thread:$0]  %s73, 256, %s75, [#allocation5], 128, 128, 8
    $region17: #{vae_loss.1} parent=1 // pred_fallthru
      _
    // Predicated region
    $region18: #{vae_loss.1} parent=1 // pred_check
      _
    $region19: #{vae_loss.1} parent=1 // pred_check_branch
      %82 = sbr.rel (0) target = $region21
    $region20: #{vae_loss.1} parent=1 // pred_region
      %s83 = sadd.s32 0, 0
      %p84 = scmp.lt.s32.totalorder %s83, 0
      %s85 = scalar_select %p84, %s83, 0
      %s87 = ssub.s32 64, 64
      %88 = vsyncadd [#allocation5], %s87
      %s89 = smul.addr %s85, 64
      %s90 = scalar_lea.hbm %s4, %s89
      %s92 = sshll.u32 [#allocation6], 4
      %s93 = int_to_ptr.vmem [resolvable:$true] %s92
      %95 = dma.hbm_to_vmem [thread:$0]  %s90, 64, %s93, [#allocation5]
    $region21: #{vae_loss.1} parent=1 // pred_fallthru
      _
    // Predicated region
    $region22: #{vae_loss.1} parent=1 // pred_check
      _
    $region23: #{vae_loss.1} parent=1 // pred_check_branch
      %97 = sbr.rel (0) target = $region25
    $region24: #{vae_loss.1} parent=1 // pred_region
      %s98 = sadd.s32 0, 0
      %p99 = scmp.lt.s32.totalorder %s98, 0
      %s100 = scalar_select %p99, %s98, 0
      %s102 = ssub.s32 64, 64
      %103 = vsyncadd [#allocation8], %s102
      %s104 = smul.addr %s100, 64
      %s105 = scalar_lea.hbm %s5, %s104
      %s107 = sshll.u32 [#allocation7], 4
      %s108 = int_to_ptr.vmem [resolvable:$true] %s107
      %110 = dma.hbm_to_vmem [thread:$0]  %s105, 64, %s108, [#allocation8]
    $region25: #{vae_loss.1} parent=1 // pred_fallthru
      _
    // Predicated region
    $region26: #{vae_loss.1} parent=1 // pred_check
      _
    $region27: #{vae_loss.1} parent=1 // pred_check_branch
      %112 = sbr.rel (0) target = $region29
    $region28: #{vae_loss.1} parent=1 // pred_region
      %113 = dma.done [#allocation3], 256
    $region29: #{vae_loss.1} parent=1 // pred_fallthru
      _
    // Predicated region
    $region30: #{vae_loss.1} parent=1 // pred_check
      _
    $region31: #{vae_loss.1} parent=1 // pred_check_branch
      %115 = sbr.rel (0) target = $region33
    $region32: #{vae_loss.1} parent=1 // pred_region
      %116 = dma.done [#allocation5], 256
    $region33: #{vae_loss.1} parent=1 // pred_fallthru
      _
    // Predicated region
    $region34: #{vae_loss.1} parent=1 // pred_check
      _
    $region35: #{vae_loss.1} parent=1 // pred_check_branch
      %118 = sbr.rel (0) target = $region37
    $region36: #{vae_loss.1} parent=1 // pred_region
      %119 = dma.done [#allocation5], 64
    $region37: #{vae_loss.1} parent=1 // pred_fallthru
      _
    // Predicated region
    $region38: #{vae_loss.1} parent=1 // pred_check
      _
    $region39: #{vae_loss.1} parent=1 // pred_check_branch
      %121 = sbr.rel (0) target = $region41
    $region40: #{vae_loss.1} parent=1 // pred_region
      %122 = dma.done [#allocation8], 64
    $region41: #{vae_loss.1} parent=1 // pred_fallthru
      _
    %s123 = sadd.s32 0, 0
    %p124 = scmp.lt.s32.totalorder %s123, 0
    %s125 = scalar_select %p124, %s123, 0
    %s126 = smul.u32 2, %s125
    %p127 = scmp.lt.s32.totalorder %s126, 1
    %s128 = scalar_select %p127, %s126, 1
    %s129 = smul.addr %s128, 8
    %s130 = scalar_lea.vmem %s0, %s129
    %s131 = sadd.s32 0, 0
    %p132 = scmp.lt.s32.totalorder %s131, 0
    %s133 = scalar_select %p132, %s131, 0
    %s134 = smul.u32 2, %s133
    %p135 = scmp.lt.s32.totalorder %s134, 1
    %s136 = scalar_select %p135, %s134, 1
    %s137 = smul.addr %s136, 8
    %s138 = scalar_lea.vmem %s1, %s137
    %s139 = sadd.s32 0, 0
    %p140 = scmp.lt.s32.totalorder %s139, 0
    %s141 = scalar_select %p140, %s139, 0
    %s142 = smul.u32 2, %s141
    %p143 = scmp.lt.s32.totalorder %s142, 1
    %s144 = scalar_select %p143, %s142, 1
    %s145 = smul.addr %s144, 8
    %s146 = scalar_lea.vmem %s0, %s145
    %s147 = sadd.s32 0, 0
    %p148 = scmp.lt.s32.totalorder %s147, 0
    %s149 = scalar_select %p148, %s147, 0
    %s150 = smul.u32 2, %s149
    %s151 = sadd.s32 0, 0
    %p152 = scmp.lt.s32.totalorder %s151, 0
    %s153 = scalar_select %p152, %s151, 0
    %s154 = smul.u32 2, %s153
    %p155 = scmp.lt.s32.totalorder %s154, 1
    %s156 = scalar_select %p155, %s154, 1
    %s157 = smul.addr %s156, 8
    %s158 = scalar_lea.vmem %s1, %s157
    %s159 = sadd.s32 0, 0
    %p160 = scmp.lt.s32.totalorder %s159, 0
    %s161 = scalar_select %p160, %s159, 0
    %s162 = smul.u32 2, %s161
    %s163 = sadd.s32 0, 0
    %p164 = scmp.lt.s32.totalorder %s163, 0
    %s165 = scalar_select %p164, %s163, 0
    %s166 = smul.u32 2, %s165
    %s167 = sadd.s32 0, 0
    %p168 = scmp.lt.s32.totalorder %s167, 0
    %s169 = scalar_select %p168, %s167, 0
    %s170 = smul.u32 2, %s169
    %s171 = sadd.s32 0, 0
    %p172 = scmp.lt.s32.totalorder %s171, 0
    %s173 = scalar_select %p172, %s171, 0
    %s174 = sadd.s32 0, 0
    %p175 = scmp.lt.s32.totalorder %s174, 0
    %s176 = scalar_select %p175, %s174, 0
    %s177 = sadd.s32 0, 0
    %p178 = scmp.eq.s32.totalorder 0, 0
    // Predicated region
    $region42: #{vae_loss.1} parent=1 // pred_check
      %p179 = pneg %p178
    $region43: #{vae_loss.1} parent=1 // pred_check_branch
      %181 = sbr.rel (%p179) target = $region45
    $region44: #{vae_loss.1} parent=1 // pred_region
      %vm182 = vcmask 196608
      %183 = vst.msk [vmem:[%s6] sm:$0x1] %vm182, 0.0
      %vm184 = vcmask 466944
      %185 = vst.msk [vmem:[%s7] sm:$0x1] %vm184, 0.0
      %vm186 = vcmask 253952
      %187 = vst.msk [vmem:[%s8] sm:$0x1] %vm186, 0.0
    $region45: #{vae_loss.1} parent=1 // pred_fallthru
      _
    %s188 = smul.u32 %s177, 16
    %p189 = scmp.lt.s32.totalorder %s188, 16
    // Predicated region
    $region46: #{vae_loss.1} parent=1 // pred_check
      %p190 = pneg %p189
    $region47: #{vae_loss.1} parent=1 // pred_check_branch
      %192 = sbr.rel (%p190) target = $region49
    $region48: #{vae_loss.1} parent=1 // pred_region
      %v193 = vld [vmem:[%s146] sm:$0xff]
      %v194 = vld [vmem:[%s146 + $0x8] sm:$0xff]
      %v195 = vld [vmem:[%s158] sm:$0xff]
      %v196 = vld [vmem:[%s158 + $0x8] sm:$0xff]
      %v197 = vsub.f32 %v193, %v195
      %v198 = vsub.f32 %v194, %v196
      %v199 = vlaneseq
      %v200 = vshrl.u32 %v199, 7
      %v201 = vadd.s32 %v200, 8
      %v202 = vstv %s188
      %v203 = vadd.s32 %v200, %v202
      %v204 = vadd.s32 %v201, %v202
      %vm205 = vcmp.lt.s32.totalorder %v203, 16
      %vm206 = vcmp.lt.s32.totalorder %v204, 16
      %v207 = vmul.f32 %v197, %v197
      %v208 = vmul.f32 %v198, %v198
      %v209 = vsel %vm205, %v207, 0.0
      %v210 = vsel %vm206, %v208, 0.0
      %v211 = vld [vmem:[%s6] sm:$0x1]
      %vm212 = vcmask 203776
      %v213 = vsel %vm212, %v209, 0.0
      %v214 = vsel %vm212, %v210, 0.0
      %v215 = vadd.f32 %v213, %v214
      %v216 = vrot.slane %v215, 4
      %v217 = vadd.f32 %v215, %v216
      %v218 = vrot.slane %v217, 2
      %v219 = vadd.f32 %v217, %v218
      %v220 = vrot.slane %v219, 1
      %v221 = vadd.f32 %v219, %v220
      %v222 = vadd.f32 %v211, %v221
      %vm223 = vcmask 196608
      %224 = vst.msk [vmem:[%s6] sm:$0x1] %vm223, %v222
      %v225 = vld [vmem:[#allocation2] sm:$0xff]
      %v226 = vld [vmem:[#allocation2 + $0x8] sm:$0xff]
      %v227 = vld [vmem:[#allocation4] sm:$0xff]
      %v228 = vld [vmem:[#allocation4 + $0x8] sm:$0xff]
      %v229 = vsub.f32 %v225, %v227
      %v230 = vsub.f32 %v226, %v228
      %v231 = vmul.f32 %v229, %v229
      %v232 = vmul.f32 %v230, %v230
      %v233 = vsel %vm205, %v231, 0.0
      %v234 = vsel %vm206, %v232, 0.0
      %v235 = vld [vmem:[%s7] sm:$0x1]
      %vm236 = vcmask 474112
      %v237 = vsel %vm236, %v233, 0.0
      %v238 = vsel %vm236, %v234, 0.0
      %v239 = vadd.f32 %v237, %v238
      %v240 = vrot.slane %v239, 4
      %v241 = vadd.f32 %v239, %v240
      %v242 = vrot.slane %v241, 2
      %v243 = vadd.f32 %v241, %v242
      %v244 = vrot.slane %v243, 1
      %v245 = vadd.f32 %v243, %v244
      %v246 = vadd.f32 %v235, %v245
      %vm247 = vcmask 466944
      %248 = vst.msk [vmem:[%s7] sm:$0x1] %vm247, %v246
    $region49: #{vae_loss.1} parent=1 // pred_fallthru
      _
    %s249 = smul.u32 %s177, 4
    %p250 = scmp.lt.s32.totalorder %s249, 4
    // Predicated region
    $region50: #{vae_loss.1} parent=1 // pred_check
      %p251 = pneg %p250
    $region51: #{vae_loss.1} parent=1 // pred_check_branch
      %253 = sbr.rel (%p251) target = $region53
    $region52: #{vae_loss.1} parent=1 // pred_region
      %v254 = vld [vmem:[#allocation6] sm:$0xf]
      %v255 = vld [vmem:[#allocation7] sm:$0xf]
      %v256 = vmul.f32 %v255, %v255
      %v257 = vmul.f32 %v254, %v254
      %v258 = vadd.f32 %v256, %v257
      %v259 = vsub.f32 %v258, 1.0
      %v260 = vmul.f32 %v259, 0.5
      %v261 = vlog2.pop %v255
      %v262 = vmul.f32 %v261, 0.6931472
      %v263 = vsub.f32 %v260, %v262
      %v264 = vlaneseq
      %v265 = vshrl.u32 %v264, 7
      %v266 = vstv %s249
      %v267 = vadd.s32 %v265, %v266
      %vm268 = vcmp.lt.s32.totalorder %v267, 4
      %v269 = vsel %vm268, %v263, 0.0
      %v270 = vld [vmem:[%s8] sm:$0x1]
      %vm271 = vcmask 257024
      %v272 = vsel %vm271, %v269, 0.0
      %v273 = vrot.slane %v272, 4
      %v274 = vadd.f32 %v272, %v273
      %v275 = vrot.slane %v274, 2
      %v276 = vadd.f32 %v274, %v275
      %v277 = vrot.slane %v276, 1
      %v278 = vadd.f32 %v276, %v277
      %v279 = vadd.f32 %v270, %v278
      %vm280 = vcmask 253952
      %281 = vst.msk [vmem:[%s8] sm:$0x1] %vm280, %v279
    $region53: #{vae_loss.1} parent=1 // pred_fallthru
      _
    // Predicated region
    $region54: #{vae_loss.1} parent=1 // pred_check
      _
    $region55: #{vae_loss.1} parent=1 // pred_check_branch
      %283 = sbr.rel (0) target = $region57
    $region56: #{vae_loss.1} parent=1 // pred_region
      _
    $region57: #{vae_loss.1} parent=1 // pred_fallthru
      _
    // Predicated region
    $region58: #{vae_loss.1} parent=1 // pred_check
      _
    $region59: #{vae_loss.1} parent=1 // pred_check_branch
      %285 = sbr.rel (0) target = $region61
    $region60: #{vae_loss.1} parent=1 // pred_region
      _
    $region61: #{vae_loss.1} parent=1 // pred_fallthru
      _
    // Predicated region
    $region62: #{vae_loss.1} parent=1 // pred_check
      _
    $region63: #{vae_loss.1} parent=1 // pred_check_branch
      %287 = sbr.rel (0) target = $region65
    $region64: #{vae_loss.1} parent=1 // pred_region
      _
    $region65: #{vae_loss.1} parent=1 // pred_fallthru
      _
    // Predicated region
    $region66: #{vae_loss.1} parent=1 // pred_check
      _
    $region67: #{vae_loss.1} parent=1 // pred_check_branch
      %289 = sbr.rel (0) target = $region69
    $region68: #{vae_loss.1} parent=1 // pred_region
      _
    $region69: #{vae_loss.1} parent=1 // pred_fallthru
      _
    // Predicated region
    $region70: #{vae_loss.1} parent=1 // pred_check
      _
    $region71: #{vae_loss.1} parent=1 // pred_check_branch
      %291 = sbr.rel (0) target = $region73
    $region72: #{vae_loss.1} parent=1 // pred_region
      _
    $region73: #{vae_loss.1} parent=1 // pred_fallthru
      _
    // Predicated region
    $region74: #{vae_loss.1} parent=1 // pred_check
      _
    $region75: #{vae_loss.1} parent=1 // pred_check_branch
      %293 = sbr.rel (0) target = $region77
    $region76: #{vae_loss.1} parent=1 // pred_region
      _
    $region77: #{vae_loss.1} parent=1 // pred_fallthru
      _
    %294 = vsyncpa [#allocation3], 1
    %295 = vsyncpa [#allocation5], 1
    %296 = vsyncpa [#allocation8], 1

</llo_original>
